<compile_context>
chip_gen: v7x
topology: tpu7x:2x2x1
jax: 0.10.0
libtpu: 0.0.40
codegen_flags: <defaults>
</compile_context>

<pallas_src>
import functools

import jax
import jax.numpy as jnp
from jax.experimental import pallas as pl
from jax.experimental.pallas import tpu as pltpu

_LANE = 128
_TILE_B = 16            # bf16 min tile is (16, 128): round batch tiles to 16
_MiB = 1024 * 1024


def _round_up(x, m):
    return ((x + m - 1) // m) * m


def _vmem_capacity_bytes():
    """Per-TensorCore VMEM capacity; conservative fallback = v7x (64 MiB)."""
    try:
        cap = getattr(pltpu.get_tpu_info(), "vmem_capacity_bytes", None)
        if cap:
            return int(cap)
    except Exception:
        pass
    return 64 * _MiB


def _mlp_kernel(x_ref, w1_ref, b1_ref, w2_ref, b2_ref, w3_ref, b3_ref, o_ref):
    # x_ref: [TB, D] f32 (cast to bf16 in-register); w*: bf16 [in, out];
    # b*: [1, *] f32; o_ref: [TB, O] f32 (unpadded narrow store).
    x = x_ref[...].astype(jnp.bfloat16)

    h1 = jnp.dot(x, w1_ref[...], preferred_element_type=jnp.float32)
    h1 = jnp.maximum(h1 + b1_ref[...], 0.0)              # fc1 + ReLU (f32 VPU)
    # dropout (eval mode) == identity

    h2 = jnp.dot(h1.astype(jnp.bfloat16), w2_ref[...],
                 preferred_element_type=jnp.float32)
    h2 = jnp.maximum(h2 + b2_ref[...], 0.0)              # fc2 + ReLU
    # dropout (eval mode) == identity

    out = jnp.dot(h2.astype(jnp.bfloat16), w3_ref[...],
                  preferred_element_type=jnp.float32)
    out = out + b3_ref[...]                               # fc3 (lane-padded compute)
    o_ref[...] = out[:, : o_ref.shape[-1]].astype(o_ref.dtype)   # narrow store


@functools.partial(jax.jit, static_argnames=("block_b",))
def sentiment_nn_forward(x, w1, b1, w2, b2, w3, b3, *, block_b=4096):
    """Fused MLP forward. x: [B, D] f32 (or bf16). Returns [B, output_size] f32."""
    B, D = x.shape
    H1 = w1.shape[1]
    H2 = w2.shape[1]
    O = w3.shape[1]
    O_pad = _round_up(O, _LANE)     # compute-only lane padding for fc3

    # fc3 weight/bias lane-padded (resident; negligible bytes) so the last
    # matmul / bias-add run on full-width vregs; the *output* stays unpadded.
    w3p = jnp.pad(w3, ((0, 0), (0, O_pad - O))).astype(jnp.bfloat16)
    b3p = jnp.pad(b3, ((0, 0), (0, O_pad - O)))
    w1_bf = w1.astype(jnp.bfloat16)
    w2_bf = w2.astype(jnp.bfloat16)

    x_bytes = jnp.dtype(x.dtype).itemsize

    def _vmem_estimate(tb):
        x_tiles = 2 * tb * D * x_bytes                       # x tile, double-buffered
        out_tiles = 2 * tb * O_pad * 4                       # out tile (lane-padded in VMEM)
        weights = 2 * ((D * H1 + H1 * H2 + H2 * O_pad) * 2   # bf16 weights (2 bufs)
                       + (H1 + H2 + O_pad) * 4)              # f32 biases
        interm = tb * (D * 2                                 # bf16 recast of x
                       + H1 * (4 + 2) + H2 * (4 + 2)         # h1/h2 f32 + bf16 recasts
                       + O_pad * 4)                          # fc3 f32 accumulator
        return x_tiles + out_tiles + weights + interm

    vmem_cap = _vmem_capacity_bytes()
    budget = vmem_cap - 20 * _MiB          # headroom for Mosaic scratch / semaphores

    # ---- batch-tile selection ------------------------------------------------
    bb = max(_TILE_B, min(block_b, _round_up(B, _TILE_B)))
    bb = _round_up(bb, _TILE_B)
    # keep >=2 grid steps when the batch allows it (v7x: feed both TensorCores)
    bb = min(bb, max(_TILE_B, _round_up(-(-B // 2), _TILE_B)))
    while bb > _TILE_B and _vmem_estimate(bb) > budget:
        bb = max(_TILE_B, _round_up(bb // 2, _TILE_B))

    B_pad = _round_up(B, bb)
    if B_pad != B:                          # ragged batch only; demo takes no-pad path
        x = jnp.pad(x, ((0, B_pad - B), (0, 0)))

    vmem_limit = int(min(vmem_cap - 16 * _MiB,
                         max(32 * _MiB, _vmem_estimate(bb) + 8 * _MiB)))

    grid = (B_pad // bb,)

    out = pl.pallas_call(
        _mlp_kernel,
        out_shape=jax.ShapeDtypeStruct((B_pad, O), jnp.float32),
        grid_spec=pl.GridSpec(
            grid=grid,
            in_specs=[
                pl.BlockSpec((bb, D), lambda i: (i, 0)),       # x tile (streamed, f32)
                pl.BlockSpec((D, H1), lambda i: (0, 0)),       # W1 (resident)
                pl.BlockSpec((1, H1), lambda i: (0, 0)),       # b1
                pl.BlockSpec((H1, H2), lambda i: (0, 0)),      # W2
                pl.BlockSpec((1, H2), lambda i: (0, 0)),       # b2
                pl.BlockSpec((H2, O_pad), lambda i: (0, 0)),   # W3 (lane-padded)
                pl.BlockSpec((1, O_pad), lambda i: (0, 0)),    # b3
            ],
            out_specs=pl.BlockSpec((bb, O), lambda i: (i, 0)),  # narrow (unpadded) logits
        ),
        compiler_params=pltpu.CompilerParams(
            dimension_semantics=("parallel",),   # batch steps shard across TCs
            vmem_limit_bytes=vmem_limit,
        ),
    )(x, w1_bf, b1, w2_bf, b2, w3p, b3p)

    return out[:B]


def init_params(key, input_dim, output_size):
    """Deterministic init matching nn.Linear shapes (stored as [in, out])."""
    dims = [(input_dim, 64), (64, 32), (32, output_size)]
    params = []
    for i, (fan_in, fan_out) in enumerate(dims):
        kw, kb = jax.random.split(jax.random.fold_in(key, i))
        bound = 1.0 / jnp.sqrt(fan_in)
        w = jax.random.uniform(kw, (fan_in, fan_out), jnp.float32, -bound, bound)
        b = jax.random.uniform(kb, (1, fan_out), jnp.float32, -bound, bound)
        params += [w, b]
    return params


def reference_forward_f32(x, w1, b1, w2, b2, w3, b3):
    h = jnp.maximum(x @ w1 + b1, 0.0)
    h = jnp.maximum(h @ w2 + b2, 0.0)
    return h @ w3 + b3


def reference_forward_bf16(x, w1, b1, w2, b2, w3, b3):
    """Mirrors the kernel's bf16-operand / f32-accumulate numerics."""
    bf = jnp.bfloat16
    h = jnp.dot(x.astype(bf), w1.astype(bf), preferred_element_type=jnp.float32)
    h = jnp.maximum(h + b1, 0.0)
    h = jnp.dot(h.astype(bf), w2.astype(bf), preferred_element_type=jnp.float32)
    h = jnp.maximum(h + b2, 0.0)
    out = jnp.dot(h.astype(bf), w3.astype(bf), preferred_element_type=jnp.float32)
    return out + b3


if __name__ == "__main__":
    key = jax.random.PRNGKey(0)

    batch = 16          # small demo batch (wrapper tiles; no padding needed here)
    input_dim = 256     # size of TF-IDF vectors (X_train.shape[1])
    output_size = 5     # number of sentiment classes

    kx, kp = jax.random.split(key)
    x = jax.random.normal(kx, (batch, input_dim), jnp.float32)
    params = init_params(kp, input_dim, output_size)

    out = sentiment_nn_forward(x, *params)
    out = jax.block_until_ready(out)
    assert out.shape == (batch, output_size), out.shape

    # Exact-semantics check vs. a pure-JAX bf16/f32 reference.
    ref_bf16 = reference_forward_bf16(x, *params)
    assert jnp.allclose(out, ref_bf16, atol=2e-3, rtol=2e-3), "mismatch vs bf16 ref"

    # Loose sanity check vs. the full-f32 PyTorch-equivalent forward.
    ref_f32 = reference_forward_f32(x, *params)
    assert jnp.allclose(out, ref_f32, atol=5e-2, rtol=5e-2), "mismatch vs f32 ref"

    print("KERNEL_OK")
</pallas_src>

<mosaic_0001>
module attributes {stable_mosaic.version = 11 : i64} {
  func.func @_mlp_kernel(%arg0: i32, %arg1: memref<16x256xf32, #tpu.memory_space<vmem>>, %arg2: memref<256x64xbf16, #tpu.memory_space<vmem>>, %arg3: memref<1x64xf32, #tpu.memory_space<vmem>>, %arg4: memref<64x32xbf16, #tpu.memory_space<vmem>>, %arg5: memref<1x32xf32, #tpu.memory_space<vmem>>, %arg6: memref<32x128xbf16, #tpu.memory_space<vmem>>, %arg7: memref<1x128xf32, #tpu.memory_space<vmem>>, %arg8: memref<16x5xf32, #tpu.memory_space<vmem>>) attributes {dimension_semantics = [#tpu.dimension_semantics<parallel>], iteration_bounds = array<i64: 1>, scalar_prefetch = 0 : i64, scratch_operands = 0 : i64, tpu.core_type = #tpu.core_type<tc>, window_params = [{transform_indices = @transform_0, window_bounds = array<i64: 16, 256>}, {pipeline_mode = #tpu.pipeline_mode<synchronous>, transform_indices = @transform_1, window_bounds = array<i64: 256, 64>}, {pipeline_mode = #tpu.pipeline_mode<synchronous>, transform_indices = @transform_2, window_bounds = array<i64: 1, 64>}, {pipeline_mode = #tpu.pipeline_mode<synchronous>, transform_indices = @transform_3, window_bounds = array<i64: 64, 32>}, {pipeline_mode = #tpu.pipeline_mode<synchronous>, transform_indices = @transform_4, window_bounds = array<i64: 1, 32>}, {pipeline_mode = #tpu.pipeline_mode<synchronous>, transform_indices = @transform_5, window_bounds = array<i64: 32, 128>}, {pipeline_mode = #tpu.pipeline_mode<synchronous>, transform_indices = @transform_6, window_bounds = array<i64: 1, 128>}, {transform_indices = @transform_7, window_bounds = array<i64: 16, 5>}]} {
    %c0 = arith.constant 0 : index
    %c0_0 = arith.constant 0 : index
    %0 = vector.load %arg1[%c0, %c0_0] : memref<16x256xf32, #tpu.memory_space<vmem>>, vector<16x256xf32>
    %1 = arith.truncf %0 : vector<16x256xf32> to vector<16x256xbf16>
    %c0_1 = arith.constant 0 : index
    %c0_2 = arith.constant 0 : index
    %2 = vector.load %arg2[%c0_1, %c0_2] : memref<256x64xbf16, #tpu.memory_space<vmem>>, vector<256x64xbf16>
    %cst = arith.constant dense<0.000000e+00> : vector<16x64xf32>
    %3 = tpu.matmul %1, %2, %cst {dimension_numbers = #tpu.dot_dimension_numbers<[1], [0], [0], [1], [0, 0, 1, 1], [], []>} : vector<16x256xbf16>, vector<256x64xbf16>, vector<16x64xf32> -> vector<16x64xf32>
    %c0_3 = arith.constant 0 : index
    %c0_4 = arith.constant 0 : index
    %4 = vector.load %arg3[%c0_3, %c0_4] : memref<1x64xf32, #tpu.memory_space<vmem>>, vector<1x64xf32>
    %5 = vector.broadcast %4 : vector<1x64xf32> to vector<16x64xf32>
    %6 = arith.addf %3, %5 : vector<16x64xf32>
    %cst_5 = arith.constant 0.000000e+00 : f32
    %7 = vector.broadcast %cst_5 : f32 to vector<16x64xf32>
    %8 = arith.maximumf %6, %7 : vector<16x64xf32>
    %9 = arith.truncf %8 : vector<16x64xf32> to vector<16x64xbf16>
    %c0_6 = arith.constant 0 : index
    %c0_7 = arith.constant 0 : index
    %10 = vector.load %arg4[%c0_6, %c0_7] : memref<64x32xbf16, #tpu.memory_space<vmem>>, vector<64x32xbf16>
    %cst_8 = arith.constant dense<0.000000e+00> : vector<16x32xf32>
    %11 = tpu.matmul %9, %10, %cst_8 {dimension_numbers = #tpu.dot_dimension_numbers<[1], [0], [0], [1], [0, 0, 1, 1], [], []>} : vector<16x64xbf16>, vector<64x32xbf16>, vector<16x32xf32> -> vector<16x32xf32>
    %c0_9 = arith.constant 0 : index
    %c0_10 = arith.constant 0 : index
    %12 = vector.load %arg5[%c0_9, %c0_10] : memref<1x32xf32, #tpu.memory_space<vmem>>, vector<1x32xf32>
    %13 = vector.broadcast %12 : vector<1x32xf32> to vector<16x32xf32>
    %14 = arith.addf %11, %13 : vector<16x32xf32>
    %cst_11 = arith.constant 0.000000e+00 : f32
    %15 = vector.broadcast %cst_11 : f32 to vector<16x32xf32>
    %16 = arith.maximumf %14, %15 : vector<16x32xf32>
    %17 = arith.truncf %16 : vector<16x32xf32> to vector<16x32xbf16>
    %c0_12 = arith.constant 0 : index
    %c0_13 = arith.constant 0 : index
    %18 = vector.load %arg6[%c0_12, %c0_13] : memref<32x128xbf16, #tpu.memory_space<vmem>>, vector<32x128xbf16>
    %cst_14 = arith.constant dense<0.000000e+00> : vector<16x128xf32>
    %19 = tpu.matmul %17, %18, %cst_14 {dimension_numbers = #tpu.dot_dimension_numbers<[1], [0], [0], [1], [0, 0, 1, 1], [], []>} : vector<16x32xbf16>, vector<32x128xbf16>, vector<16x128xf32> -> vector<16x128xf32>
    %c0_15 = arith.constant 0 : index
    %c0_16 = arith.constant 0 : index
    %20 = vector.load %arg7[%c0_15, %c0_16] : memref<1x128xf32, #tpu.memory_space<vmem>>, vector<1x128xf32>
    %21 = vector.broadcast %20 : vector<1x128xf32> to vector<16x128xf32>
    %22 = arith.addf %19, %21 : vector<16x128xf32>
    %23 = vector.extract_strided_slice %22 {offsets = [0, 0], sizes = [16, 5], strides = [1, 1]} : vector<16x128xf32> to vector<16x5xf32>
    %c0_17 = arith.constant 0 : index
    %c0_18 = arith.constant 0 : index
    %24 = vector.load %arg8[%c0_17, %c0_18] : memref<16x5xf32, #tpu.memory_space<vmem>>, vector<16x5xf32>
    tpu.vector_store %arg8[%c0_17, %c0_18], %23 {strides = array<i32>} : memref<16x5xf32, #tpu.memory_space<vmem>>, vector<16x5xf32>,
    return
  }
  func.func @transform_0(%arg0: i32) -> (i32, i32) {
    %c0_i32 = arith.constant 0 : i32
    %c0_i32_0 = arith.constant 0 : i32
    return %arg0, %c0_i32 : i32, i32
  }
  func.func @transform_1(%arg0: i32) -> (i32, i32) {
    %c0_i32 = arith.constant 0 : i32
    %c0_i32_0 = arith.constant 0 : i32
    %c0_i32_1 = arith.constant 0 : i32
    return %c0_i32, %c0_i32_0 : i32, i32
  }
  func.func @transform_2(%arg0: i32) -> (i32, i32) {
    %c0_i32 = arith.constant 0 : i32
    %c0_i32_0 = arith.constant 0 : i32
    %c0_i32_1 = arith.constant 0 : i32
    return %c0_i32, %c0_i32_0 : i32, i32
  }
  func.func @transform_3(%arg0: i32) -> (i32, i32) {
    %c0_i32 = arith.constant 0 : i32
    %c0_i32_0 = arith.constant 0 : i32
    %c0_i32_1 = arith.constant 0 : i32
    return %c0_i32, %c0_i32_0 : i32, i32
  }
  func.func @transform_4(%arg0: i32) -> (i32, i32) {
    %c0_i32 = arith.constant 0 : i32
    %c0_i32_0 = arith.constant 0 : i32
    %c0_i32_1 = arith.constant 0 : i32
    return %c0_i32, %c0_i32_0 : i32, i32
  }
  func.func @transform_5(%arg0: i32) -> (i32, i32) {
    %c0_i32 = arith.constant 0 : i32
    %c0_i32_0 = arith.constant 0 : i32
    %c0_i32_1 = arith.constant 0 : i32
    return %c0_i32, %c0_i32_0 : i32, i32
  }
  func.func @transform_6(%arg0: i32) -> (i32, i32) {
    %c0_i32 = arith.constant 0 : i32
    %c0_i32_0 = arith.constant 0 : i32
    %c0_i32_1 = arith.constant 0 : i32
    return %c0_i32, %c0_i32_0 : i32, i32
  }
  func.func @transform_7(%arg0: i32) -> (i32, i32) {
    %c0_i32 = arith.constant 0 : i32
    %c0_i32_0 = arith.constant 0 : i32
    return %arg0, %c0_i32 : i32, i32
  }
}

</mosaic_0001>

<llo_original>
// kernel: sentiment_nn_forward.1
$region0: #{sentiment_nn_forward.1}
  #allocation0 [shape = 'u32[]', space=smem, size = 0x4, offset = 0x4, fixed_abs, tag = 'smem constant byte address 0x4 - core index']
  #allocation1 [shape = 'u32[144,128]{1,0:T(1,128)}', space=vmem, size = 0x12000, scoped, tag = 'internal scratch']
  %s0 = inlined_call_operand.vmem [shape: f32[16,256], index: 0, kind: input, shape index: {}]
  %s1 = inlined_call_operand.vmem [shape: bf16[256,64], index: 1, kind: input, shape index: {}]
  %s2 = inlined_call_operand.vmem [shape: f32[1,64], index: 2, kind: input, shape index: {}]
  %s3 = inlined_call_operand.vmem [shape: bf16[64,32], index: 3, kind: input, shape index: {}]
  %s4 = inlined_call_operand.vmem [shape: f32[1,32], index: 4, kind: input, shape index: {}]
  %s5 = inlined_call_operand.vmem [shape: bf16[32,128], index: 5, kind: input, shape index: {}]
  %s6 = inlined_call_operand.vmem [shape: f32[1,128], index: 6, kind: input, shape index: {}]
  %s7 = inlined_call_operand.vmem [shape: f32[16,5], index: 7, kind: output, shape index: {}]
  %s8 = sld [smem:[#allocation0]]
  $region38: #{sentiment_nn_forward.1} parent=0
    _
  %s10 = ssub.s32 1, %s8
  %s11 = scalar_select 0, %s10, %s8
  // Predicated region
  $region2: #{sentiment_nn_forward.1} parent=0 // pred_check
    _
  $region3: #{sentiment_nn_forward.1} parent=0 // pred_check_branch
    %13 = sbr.rel (0) target = $region5
  $region4: #{sentiment_nn_forward.1} parent=0 // pred_region
    _
  $region5: #{sentiment_nn_forward.1} parent=0 // pred_fallthru
    _
  // Predicated region
  $region6: #{sentiment_nn_forward.1} parent=0 // pred_check
    _
  $region7: #{sentiment_nn_forward.1} parent=0 // pred_check_branch
    %15 = sbr.rel (0) target = $region9
  $region8: #{sentiment_nn_forward.1} parent=0 // pred_region
    _
  $region9: #{sentiment_nn_forward.1} parent=0 // pred_fallthru
    _
  // Predicated region
  $region10: #{sentiment_nn_forward.1} parent=0 // pred_check
    _
  $region11: #{sentiment_nn_forward.1} parent=0 // pred_check_branch
    %17 = sbr.rel (0) target = $region13
  $region12: #{sentiment_nn_forward.1} parent=0 // pred_region
    _
  $region13: #{sentiment_nn_forward.1} parent=0 // pred_fallthru
    _
  // Predicated region
  $region14: #{sentiment_nn_forward.1} parent=0 // pred_check
    _
  $region15: #{sentiment_nn_forward.1} parent=0 // pred_check_branch
    %19 = sbr.rel (0) target = $region17
  $region16: #{sentiment_nn_forward.1} parent=0 // pred_region
    _
  $region17: #{sentiment_nn_forward.1} parent=0 // pred_fallthru
    _
  // Predicated region
  $region18: #{sentiment_nn_forward.1} parent=0 // pred_check
    _
  $region19: #{sentiment_nn_forward.1} parent=0 // pred_check_branch
    %21 = sbr.rel (0) target = $region21
  $region20: #{sentiment_nn_forward.1} parent=0 // pred_region
    _
  $region21: #{sentiment_nn_forward.1} parent=0 // pred_fallthru
    _
  // Predicated region
  $region22: #{sentiment_nn_forward.1} parent=0 // pred_check
    _
  $region23: #{sentiment_nn_forward.1} parent=0 // pred_check_branch
    %23 = sbr.rel (0) target = $region25
  $region24: #{sentiment_nn_forward.1} parent=0 // pred_region
    _
  $region25: #{sentiment_nn_forward.1} parent=0 // pred_fallthru
    _
  // Predicated region
  $region26: #{sentiment_nn_forward.1} parent=0 // pred_check
    _
  $region27: #{sentiment_nn_forward.1} parent=0 // pred_check_branch
    %25 = sbr.rel (0) target = $region29
  $region28: #{sentiment_nn_forward.1} parent=0 // pred_region
    _
  $region29: #{sentiment_nn_forward.1} parent=0 // pred_fallthru
    _
  %v27 = vld [vmem:[%s0] sm:$0xff]
  %v28 = vld [vmem:[%s0 + $0x8] sm:$0xff]
  %v29 = vld [vmem:[%s0 + $0x10] sm:$0xff]
  %v30 = vld [vmem:[%s0 + $0x18] sm:$0xff]
  %v31 = vpack.c.bf16 %v29, %v27
  %v32 = vpack.c.bf16 %v30, %v28
  %v33 = vld [vmem:[%s1] sm:$0xf]
  %v34 = vld [vmem:[%s1 + $0x4] sm:$0xf]
  %v35 = vld [vmem:[%s1 + $0x8] sm:$0xf]
  %v36 = vld [vmem:[%s1 + $0xc] sm:$0xf]
  %v37 = vld [vmem:[%s1 + $0x10] sm:$0xf]
  %v38 = vld [vmem:[%s1 + $0x14] sm:$0xf]
  %v39 = vld [vmem:[%s1 + $0x18] sm:$0xf]
  %v40 = vld [vmem:[%s1 + $0x1c] sm:$0xf]
  %v41 = vld [vmem:[%s1 + $0x20] sm:$0xf]
  %v42 = vld [vmem:[%s1 + $0x24] sm:$0xf]
  %v43 = vld [vmem:[%s1 + $0x28] sm:$0xf]
  %v44 = vld [vmem:[%s1 + $0x2c] sm:$0xf]
  %v45 = vld [vmem:[%s1 + $0x30] sm:$0xf]
  %v46 = vld [vmem:[%s1 + $0x34] sm:$0xf]
  %v47 = vld [vmem:[%s1 + $0x38] sm:$0xf]
  %v48 = vld [vmem:[%s1 + $0x3c] sm:$0xf]
  %v49 = vld [vmem:[%s1 + $0x40] sm:$0xf]
  %v50 = vld [vmem:[%s1 + $0x44] sm:$0xf]
  %v51 = vld [vmem:[%s1 + $0x48] sm:$0xf]
  %v52 = vld [vmem:[%s1 + $0x4c] sm:$0xf]
  %v53 = vld [vmem:[%s1 + $0x50] sm:$0xf]
  %v54 = vld [vmem:[%s1 + $0x54] sm:$0xf]
  %v55 = vld [vmem:[%s1 + $0x58] sm:$0xf]
  %v56 = vld [vmem:[%s1 + $0x5c] sm:$0xf]
  %v57 = vld [vmem:[%s1 + $0x60] sm:$0xf]
  %v58 = vld [vmem:[%s1 + $0x64] sm:$0xf]
  %v59 = vld [vmem:[%s1 + $0x68] sm:$0xf]
  %v60 = vld [vmem:[%s1 + $0x6c] sm:$0xf]
  %v61 = vld [vmem:[%s1 + $0x70] sm:$0xf]
  %v62 = vld [vmem:[%s1 + $0x74] sm:$0xf]
  %v63 = vld [vmem:[%s1 + $0x78] sm:$0xf]
  %v64 = vld [vmem:[%s1 + $0x7c] sm:$0xf]
  %v65 = vld [vmem:[%s2] sm:$0x1]
  %v67 = vlaneseq
  %v68 = vshrl.u32 %v67, 7
  %v69 = vsub.s32 0, %v68
  %v70 = vrot.slane %v65, %v69
  %v104 = vunpack.c.l.b16 %v33
  %v105 = vunpack.c.l.b16 %v34
  %v106 = vunpack.c.l.b16 %v35
  %v107 = vunpack.c.l.b16 %v36
  %v108 = vunpack.c.l.b16 %v37
  %v109 = vunpack.c.l.b16 %v38
  %v110 = vunpack.c.l.b16 %v39
  %v111 = vunpack.c.l.b16 %v40
  %v112 = vunpack.c.l.b16 %v41
  %v113 = vunpack.c.l.b16 %v42
  %v114 = vunpack.c.l.b16 %v43
  %v115 = vunpack.c.l.b16 %v44
  %v116 = vunpack.c.l.b16 %v45
  %v117 = vunpack.c.l.b16 %v46
  %v118 = vunpack.c.l.b16 %v47
  %v119 = vunpack.c.l.b16 %v48
  %v120 = vunpack.c.l.b16 %v49
  %v121 = vunpack.c.l.b16 %v50
  %v122 = vunpack.c.l.b16 %v51
  %v123 = vunpack.c.l.b16 %v52
  %v124 = vunpack.c.l.b16 %v53
  %v125 = vunpack.c.l.b16 %v54
  %v126 = vunpack.c.l.b16 %v55
  %v127 = vunpack.c.l.b16 %v56
  %v128 = vunpack.c.l.b16 %v57
  %v129 = vunpack.c.l.b16 %v58
  %v130 = vunpack.c.l.b16 %v59
  %v131 = vunpack.c.l.b16 %v60
  %v132 = vunpack.c.l.b16 %v61
  %v133 = vunpack.c.l.b16 %v62
  %v134 = vunpack.c.l.b16 %v63
  %v135 = vunpack.c.l.b16 %v64
  %v136 = vpack.c.b16 %v105, %v104
  %v137 = vpack.c.b16 %v107, %v106
  %v138 = vpack.c.b16 %v109, %v108
  %v139 = vpack.c.b16 %v111, %v110
  %v140 = vpack.c.b16 %v113, %v112
  %v141 = vpack.c.b16 %v115, %v114
  %v142 = vpack.c.b16 %v117, %v116
  %v143 = vpack.c.b16 %v119, %v118
  %v144 = vpack.c.b16 %v121, %v120
  %v145 = vpack.c.b16 %v123, %v122
  %v146 = vpack.c.b16 %v125, %v124
  %v147 = vpack.c.b16 %v127, %v126
  %v148 = vpack.c.b16 %v129, %v128
  %v149 = vpack.c.b16 %v131, %v130
  %v150 = vpack.c.b16 %v133, %v132
  %v151 = vpack.c.b16 %v135, %v134
  %168 = vmatprep.subr.bf16.mxu0 0
  %169 = vmatpush1.bf16.msra.mxu0 %v136
  %170 = vmatprep.subr.bf16.mxu0 0
  %171 = vmatpush1.bf16.msra.mxu0 %v137
  %172 = vmatprep.subr.bf16.mxu0 0
  %173 = vmatpush1.bf16.msra.mxu0 %v138
  %174 = vmatprep.subr.bf16.mxu0 0
  %175 = vmatpush1.bf16.msra.mxu0 %v139
  %176 = vmatprep.subr.bf16.mxu0 0
  %177 = vmatpush1.bf16.msra.mxu0 %v140
  %178 = vmatprep.subr.bf16.mxu0 0
  %179 = vmatpush1.bf16.msra.mxu0 %v141
  %180 = vmatprep.subr.bf16.mxu0 0
  %181 = vmatpush1.bf16.msra.mxu0 %v142
  %182 = vmatprep.subr.bf16.mxu0 0
  %183 = vmatpush1.bf16.msra.mxu0 %v143
  %184 = vmatprep.subr.bf16.mxu0 0
  %185 = vmatpush1.bf16.msra.mxu0 %v144
  %186 = vmatprep.subr.bf16.mxu0 0
  %187 = vmatpush1.bf16.msra.mxu0 %v145
  %188 = vmatprep.subr.bf16.mxu0 0
  %189 = vmatpush1.bf16.msra.mxu0 %v146
  %190 = vmatprep.subr.bf16.mxu0 0
  %191 = vmatpush1.bf16.msra.mxu0 %v147
  %192 = vmatprep.subr.bf16.mxu0 0
  %193 = vmatpush1.bf16.msra.mxu0 %v148
  %194 = vmatprep.subr.bf16.mxu0 0
  %195 = vmatpush1.bf16.msra.mxu0 %v149
  %196 = vmatprep.subr.bf16.mxu0 0
  %197 = vmatpush1.bf16.msra.mxu0 %v150
  %198 = vmatprep.subr.bf16.mxu0 0
  %199 = vmatpush1.bf16.msra.mxu0 %v151
  %200 = vmatprep.mubr.bf16.mxu0 %v32
  %201 = vmatmul.mubr.bf16.gmra.mrb[0].mxu0 %v31
  %v202 = vpop.f32.mrb[0].mxu0
  %v203 = vadd.f32 %v70, %v202
  %v204 = vpop.f32.mrb[0].mxu0
  %v205 = vpop.f32.mrb[0].mxu0
  %v206 = vadd.f32 %v70, %v205
  %v207 = vpop.f32.mrb[0].mxu0
  %208 = vdwg.mxu0
  %v209 = vmax.f32 %v203, 0.0
  %v210 = vmax.f32 %v206, 0.0
  %v211 = vpack.c.bf16 %v210, %v209
  %v212 = vld [vmem:[%s3] sm:$0xf]
  %v213 = vld [vmem:[%s3 + $0x4] sm:$0xf]
  %v214 = vld [vmem:[%s3 + $0x8] sm:$0xf]
  %v215 = vld [vmem:[%s3 + $0xc] sm:$0xf]
  %v216 = vld [vmem:[%s3 + $0x10] sm:$0xf]
  %v217 = vld [vmem:[%s3 + $0x14] sm:$0xf]
  %v218 = vld [vmem:[%s3 + $0x18] sm:$0xf]
  %v219 = vld [vmem:[%s3 + $0x1c] sm:$0xf]
  %v220 = vld [vmem:[%s4] sm:$0x1]
  %v222 = vlaneseq
  %v223 = vshrl.u32 %v222, 7
  %v224 = vsub.s32 0, %v223
  %v225 = vrot.slane %v220, %v224
  %v235 = vunpack.c.l.b16 %v212
  %v236 = vunpack.c.l.b16 %v213
  %v237 = vunpack.c.l.b16 %v214
  %v238 = vunpack.c.l.b16 %v215
  %v239 = vunpack.c.l.b16 %v216
  %v240 = vunpack.c.l.b16 %v217
  %v241 = vunpack.c.l.b16 %v218
  %v242 = vunpack.c.l.b16 %v219
  %v243 = vpack.c.b16 %v236, %v235
  %v244 = vpack.c.b16 %v238, %v237
  %v245 = vpack.c.b16 %v240, %v239
  %v246 = vpack.c.b16 %v242, %v241
  %vm251 = vcmask 523264
  %v253 = vsel %vm251, %v211, 0
  %255 = vmatprep.subr.bf16.mxu0 0
  %256 = vmatpush1.bf16.msra.mxu0 %v243
  %257 = vmatprep.subr.bf16.mxu0 0
  %258 = vmatpush1.bf16.msra.mxu0 %v244
  %259 = vmatprep.subr.bf16.mxu0 0
  %260 = vmatpush1.bf16.msra.mxu0 %v245
  %261 = vmatprep.subr.bf16.mxu0 0
  %262 = vmatpush1.bf16.msra.mxu0 %v246
  %263 = vmatprep.subr.bf16.mxu0 0
  %264 = vmatpush1.bf16.msra.mxu0 0
  %265 = vmatprep.subr.bf16.mxu0 0
  %266 = vmatpush1.bf16.msra.mxu0 0
  %267 = vmatprep.subr.bf16.mxu0 0
  %268 = vmatpush1.bf16.msra.mxu0 0
  %269 = vmatprep.subr.bf16.mxu0 0
  %270 = vmatpush1.bf16.msra.mxu0 0
  %271 = vmatprep.subr.bf16.mxu0 0
  %272 = vmatpush1.bf16.msra.mxu0 0
  %273 = vmatprep.subr.bf16.mxu0 0
  %274 = vmatpush1.bf16.msra.mxu0 0
  %275 = vmatprep.subr.bf16.mxu0 0
  %276 = vmatpush1.bf16.msra.mxu0 0
  %277 = vmatprep.subr.bf16.mxu0 0
  %278 = vmatpush1.bf16.msra.mxu0 0
  %279 = vmatprep.subr.bf16.mxu0 0
  %280 = vmatpush1.bf16.msra.mxu0 0
  %281 = vmatprep.subr.bf16.mxu0 0
  %282 = vmatpush1.bf16.msra.mxu0 0
  %283 = vmatprep.subr.bf16.mxu0 0
  %284 = vmatpush1.bf16.msra.mxu0 0
  %285 = vmatprep.subr.bf16.mxu0 0
  %286 = vmatpush1.bf16.msra.mxu0 0
  %287 = vmatprep.mubr.bf16.mxu0 0
  %288 = vmatmul.mubr.bf16.gmra.mrb[0].mxu0 %v253
  %v289 = vpop.f32.mrb[0].mxu0
  %v290 = vadd.f32 %v225, %v289
  %v291 = vpop.f32.mrb[0].mxu0
  %v292 = vpop.f32.mrb[0].mxu0
  %v293 = vadd.f32 %v225, %v292
  %v294 = vpop.f32.mrb[0].mxu0
  %295 = vdwg.mxu0
  %v296 = vmax.f32 %v290, 0.0
  %v297 = vmax.f32 %v293, 0.0
  %v298 = vpack.c.bf16 %v297, %v296
  %v299 = vld [vmem:[%s5] sm:$0xf]
  %v300 = vld [vmem:[%s5 + $0x4] sm:$0xf]
  %v301 = vld [vmem:[%s5 + $0x8] sm:$0xf]
  %v302 = vld [vmem:[%s5 + $0xc] sm:$0xf]
  %v303 = vld [vmem:[%s6] sm:$0x1]
  %v305 = vlaneseq
  %v306 = vshrl.u32 %v305, 7
  %v307 = vsub.s32 0, %v306
  %v308 = vrot.slane %v303, %v307
  %v314 = vunpack.c.l.b16 %v299
  %v315 = vunpack.c.l.b16 %v300
  %v316 = vunpack.c.l.b16 %v301
  %v317 = vunpack.c.l.b16 %v302
  %v318 = vpack.c.b16 %v315, %v314
  %v319 = vpack.c.b16 %v317, %v316
  %vm322 = vcmask 261120
  %v324 = vsel %vm322, %v298, 0
  %326 = vmatprep.subr.bf16.mxu0 0
  %327 = vmatpush1.bf16.msra.mxu0 %v318
  %328 = vmatprep.subr.bf16.mxu0 0
  %329 = vmatpush1.bf16.msra.mxu0 %v319
  %330 = vmatprep.subr.bf16.mxu0 0
  %331 = vmatpush1.bf16.msra.mxu0 0
  %332 = vmatprep.subr.bf16.mxu0 0
  %333 = vmatpush1.bf16.msra.mxu0 0
  %334 = vmatprep.subr.bf16.mxu0 0
  %335 = vmatpush1.bf16.msra.mxu0 0
  %336 = vmatprep.subr.bf16.mxu0 0
  %337 = vmatpush1.bf16.msra.mxu0 0
  %338 = vmatprep.subr.bf16.mxu0 0
  %339 = vmatpush1.bf16.msra.mxu0 0
  %340 = vmatprep.subr.bf16.mxu0 0
  %341 = vmatpush1.bf16.msra.mxu0 0
  %342 = vmatprep.subr.bf16.mxu0 0
  %343 = vmatpush1.bf16.msra.mxu0 0
  %344 = vmatprep.subr.bf16.mxu0 0
  %345 = vmatpush1.bf16.msra.mxu0 0
  %346 = vmatprep.subr.bf16.mxu0 0
  %347 = vmatpush1.bf16.msra.mxu0 0
  %348 = vmatprep.subr.bf16.mxu0 0
  %349 = vmatpush1.bf16.msra.mxu0 0
  %350 = vmatprep.subr.bf16.mxu0 0
  %351 = vmatpush1.bf16.msra.mxu0 0
  %352 = vmatprep.subr.bf16.mxu0 0
  %353 = vmatpush1.bf16.msra.mxu0 0
  %354 = vmatprep.subr.bf16.mxu0 0
  %355 = vmatpush1.bf16.msra.mxu0 0
  %356 = vmatprep.subr.bf16.mxu0 0
  %357 = vmatpush1.bf16.msra.mxu0 0
  %358 = vmatprep.mubr.bf16.mxu0 0
  %359 = vmatmul.mubr.bf16.gmra.mrb[0].mxu0 %v324
  %v360 = vpop.f32.mrb[0].mxu0
  %v361 = vadd.f32 %v308, %v360
  %v362 = vpop.f32.mrb[0].mxu0
  %v363 = vpop.f32.mrb[0].mxu0
  %v364 = vadd.f32 %v308, %v363
  %v365 = vpop.f32.mrb[0].mxu0
  %366 = vdwg.mxu0
  %vm367 = vcmask 39936
  %368 = vst.msk [vmem:[%s7] sm:$0xff] %vm367, %v361
  %369 = vst.msk [vmem:[%s7 + $0x8] sm:$0xff] %vm367, %v364
  // Predicated region
  $region30: #{sentiment_nn_forward.1} parent=0 // pred_check
    _
  $region31: #{sentiment_nn_forward.1} parent=0 // pred_check_branch
    %371 = sbr.rel (0) target = $region33
  $region32: #{sentiment_nn_forward.1} parent=0 // pred_region
    _
  $region33: #{sentiment_nn_forward.1} parent=0 // pred_fallthru
    _
  // Predicated region
  $region34: #{sentiment_nn_forward.1} parent=0 // pred_check
    _
  $region35: #{sentiment_nn_forward.1} parent=0 // pred_check_branch
    %373 = sbr.rel (0) target = $region37
  $region36: #{sentiment_nn_forward.1} parent=0 // pred_region
    _
  $region37: #{sentiment_nn_forward.1} parent=0 // pred_fallthru
    _

</llo_original>
